<compile_context>
chip_gen: v7x
topology: tpu7x:2x2x1
jax: 0.10.0
libtpu: 0.0.40
codegen_flags: <defaults>
</compile_context>

<pallas_src>
import functools

import numpy as np
import jax
import jax.numpy as jnp
from jax import lax
from jax.experimental import pallas as pl
from jax.experimental.pallas import tpu as pltpu

LEAKY_SLOPE = 0.01   # nn.LeakyReLU default negative_slope
BN_EPS = 1e-5        # nn.BatchNorm1d default eps


# ----------------------------------------------------------------------------
# Fused Pallas kernel: full network for one batch tile per grid step.
# ----------------------------------------------------------------------------
def _fused_forward_kernel(*refs, cfgs, b_tile, out_dim):
    """refs = [x, (w_i, shift_i) * n_layers, fc_w_tiled, fc_b, out].

    x_ref:       (B_TILE, L_in, C_in)        channels-last batch tile
    w_i:         (K, C_in_i, C_out_i) bf16   conv weight with BN scale folded in
    shift_i:     (1, C_out_i) f32            beta - mean*scale + conv_bias*scale
    fc_w_tiled:  (OUT, B_TILE*L_f, C_f) f32  FC weight, per-sample-tiled, in the
                                             kernel's (l, c) flatten order
    fc_b:        (1, OUT) f32
    out_ref:     (B_TILE, OUT)
    """
    n = len(cfgs)
    x_ref = refs[0]
    conv_refs = refs[1:1 + 2 * n]
    fcw_ref = refs[1 + 2 * n]
    fcb_ref = refs[2 + 2 * n]
    o_ref = refs[3 + 2 * n]

    x3 = x_ref[...].astype(jnp.float32)                # (BT, L, C_in)

    for i, cfg in enumerate(cfgs):
        w_ref = conv_refs[2 * i]                       # (K, Cin, Cout) bf16
        shift_ref = conv_refs[2 * i + 1]               # (1, Cout) f32
        k_size, pad = cfg["k"], cfg["pad"]
        l_out = cfg["l_out"]
        c_in, c_out = cfg["c_in"], cfg["c_out"]

        # Zero halo padding in registers (no scratch store/reload).
        if pad > 0:
            z = jnp.zeros((b_tile, pad, c_in), jnp.float32)
            x3 = jnp.concatenate([z, x3, z], axis=1)   # (BT, L+2p, Cin)

        # Conv1d as K accumulated matmuls with M = B_TILE * L_out rows.
        # Operands cast to bf16 for the MXU, accumulation stays f32.
        acc = None
        for k in range(k_size):
            tap = x3[:, k:k + l_out, :].reshape(b_tile * l_out, c_in)
            d = jnp.dot(tap.astype(jnp.bfloat16), w_ref[k],
                        preferred_element_type=jnp.float32)
            acc = d if acc is None else acc + d        # (BT*Lout, Cout) f32

        acc = acc + shift_ref[...]                         # conv bias + BN (folded)
        acc = jnp.where(acc >= 0, acc, LEAKY_SLOPE * acc)  # LeakyReLU

        # MaxPool1d(kernel=2, stride=2, ceil_mode=True), per sample.
        half = l_out // 2
        if l_out == 1:
            x3 = acc.reshape(b_tile, 1, c_out)
        elif l_out % 2 == 0:
            # Pairs never cross sample boundaries when l_out is even.
            pooled = acc.reshape(b_tile * half, 2, c_out).max(axis=1)
            x3 = pooled.reshape(b_tile, half, c_out)
        else:
            acc3 = acc.reshape(b_tile, l_out, c_out)
            main = acc3[:, :2 * half, :].reshape(b_tile * half, 2, c_out).max(axis=1)
            x3 = jnp.concatenate(
                [main.reshape(b_tile, half, c_out), acc3[:, 2 * half:, :]], axis=1)
        # x3: (BT, l_pool, c_out)

    # Flatten + Dropout(identity in eval) + Linear.  OUT is 1 or 2, so the MXU
    # would be ~1% utilized; compute each output column as one fused
    # multiply + reduce (contraction length L_f*C_f) on the VPU/XLU instead.
    # TODO(synk): training-mode stochastic dropout not implemented (eval semantics).
    l_f, c_f = x3.shape[1], x3.shape[2]
    xf = x3.reshape(b_tile * l_f, c_f)                 # (BT*L_f, C_f) f32
    for o in range(out_dim):
        prod = xf * fcw_ref[o]                         # (BT*L_f, C_f)
        s = jnp.sum(prod, axis=1, keepdims=True)       # (BT*L_f, 1)
        s = s.reshape(b_tile, l_f, 1).sum(axis=1)      # (BT, 1) per-sample sum
        o_ref[:, o:o + 1] = (s + fcb_ref[:, o:o + 1]).astype(o_ref.dtype)


# ----------------------------------------------------------------------------
# Wrapper: weight folding + single pallas_call for the whole forward pass.
# ----------------------------------------------------------------------------
def _prepare_fused_inputs(params, c_in, l_in, b_tile):
    """Fold eval-BN + conv bias into bf16 conv weights; build the per-sample
    tiled FC weight in the kernel's channels-last (l, c) flatten order."""
    cfgs, weights = [], []
    l_cur, c_cur = l_in, c_in
    for p in params["conv"]:
        c_out, _, k_size = p["w"].shape
        pad = int(p["padding"])
        l_out = l_cur + 2 * pad - k_size + 1            # stride=1, dilation=1
        l_pool = -(-l_out // 2)                         # ceil_mode=True
        scale = p["gamma"] / jnp.sqrt(p["var"] + BN_EPS)
        w_fold = (jnp.transpose(p["w"], (2, 1, 0))      # (K, Cin, Cout)
                  * scale[None, None, :]).astype(jnp.bfloat16)
        shift = (p["beta"] - p["mean"] * scale
                 + p["b"] * scale).reshape(1, c_out).astype(jnp.float32)
        weights += [w_fold, shift]
        cfgs.append(dict(k=k_size, pad=pad, l_in=l_cur, l_out=l_out,
                         l_pool=l_pool, c_in=c_cur, c_out=c_out))
        l_cur, c_cur = l_pool, c_out

    out_dim, fc_size = params["fc_w"].shape
    assert fc_size == l_cur * c_cur, (fc_size, l_cur, c_cur)
    # PyTorch flatten index is c*L_f + l; kernel flattens as (l, c).
    w_lc = jnp.transpose(params["fc_w"].reshape(out_dim, c_cur, l_cur),
                         (0, 2, 1))                     # (OUT, L_f, C_f)
    fcw_tiled = jnp.tile(w_lc, (1, b_tile, 1)).astype(jnp.float32)
    fc_b = params["fc_b"].reshape(1, out_dim).astype(jnp.float32)
    weights += [fcw_tiled, fc_b]
    return cfgs, weights, (l_cur, c_cur, out_dim)


def cnn1d_forward(params, x_ncl):
    """Full CNN1DModel forward (eval mode). x_ncl: (B, 6, L) PyTorch NCL layout."""
    B, c_in, l_in = x_ncl.shape
    b_tile = B if B <= 8 else 8
    b_pad = -(-B // b_tile) * b_tile

    # Single tiny layout op: NCL -> channels-last so the channel contraction
    # sits on the lane (last) dim inside the kernel.
    x_cl = jnp.transpose(x_ncl, (0, 2, 1))              # (B, L, C_in)
    if b_pad != B:
        x_cl = jnp.concatenate(
            [x_cl, jnp.zeros((b_pad - B, l_in, c_in), x_cl.dtype)], axis=0)

    cfgs, weights, (l_f, c_f, out_dim) = _prepare_fused_inputs(
        params, c_in, l_in, b_tile)

    in_specs = [pl.BlockSpec((b_tile, l_in, c_in), lambda g: (g, 0, 0))]
    for cfg in cfgs:
        in_specs.append(pl.BlockSpec((cfg["k"], cfg["c_in"], cfg["c_out"]),
                                     lambda g: (0, 0, 0)))
        in_specs.append(pl.BlockSpec((1, cfg["c_out"]), lambda g: (0, 0)))
    in_specs.append(pl.BlockSpec((out_dim, b_tile * l_f, c_f),
                                 lambda g: (0, 0, 0)))
    in_specs.append(pl.BlockSpec((1, out_dim), lambda g: (0, 0)))

    kernel = functools.partial(_fused_forward_kernel, cfgs=cfgs,
                               b_tile=b_tile, out_dim=out_dim)
    out = pl.pallas_call(
        kernel,
        out_shape=jax.ShapeDtypeStruct((b_pad, out_dim), x_ncl.dtype),
        grid=(b_pad // b_tile,),
        in_specs=in_specs,
        out_specs=pl.BlockSpec((b_tile, out_dim), lambda g: (g, 0)),
        compiler_params=pltpu.CompilerParams(
            dimension_semantics=("parallel",)),
    )(x_cl, *weights)
    return out[:B]


# ----------------------------------------------------------------------------
# Pure-JAX reference (for correctness check)
# ----------------------------------------------------------------------------
def reference_forward(params, x_ncl):
    x = x_ncl
    for p in params["conv"]:
        x = lax.conv_general_dilated(
            x, p["w"], window_strides=(1,),
            padding=[(p["padding"], p["padding"])],
            dimension_numbers=("NCH", "OIH", "NCH"))
        x = x + p["b"][None, :, None]
        scale = p["gamma"] / jnp.sqrt(p["var"] + BN_EPS)
        shift = p["beta"] - p["mean"] * scale
        x = x * scale[None, :, None] + shift[None, :, None]
        x = jnp.where(x >= 0, x, LEAKY_SLOPE * x)
        L = x.shape[-1]
        if L % 2 == 1:
            x = jnp.pad(x, ((0, 0), (0, 0), (0, 1)), constant_values=-jnp.inf)
        x = x.reshape(x.shape[0], x.shape[1], -1, 2).max(axis=-1)
    x = x.reshape(x.shape[0], -1)
    return x @ params["fc_w"].T + params["fc_b"][None, :]


# ----------------------------------------------------------------------------
# Deterministic parameter construction (mirrors __init__ shapes)
# ----------------------------------------------------------------------------
def xavier_uniform(key, shape, fan_in, fan_out):
    bound = float(np.sqrt(6.0 / (fan_in + fan_out)))
    return jax.random.uniform(key, shape, jnp.float32, -bound, bound)


def build_params(key, layer_number, inplanes, in_length,
                 filter_size=3, padding=1):
    conv_params = []
    prev_chanl = 6
    L = in_length
    for i in range(layer_number):
        cout = inplanes * (2 ** i)
        key, kw, kb = jax.random.split(key, 3)
        fan_in, fan_out = prev_chanl * filter_size, cout * filter_size
        w = xavier_uniform(kw, (cout, prev_chanl, filter_size), fan_in, fan_out)
        b_bound = 1.0 / np.sqrt(fan_in)
        b = jax.random.uniform(kb, (cout,), jnp.float32, -b_bound, b_bound)
        conv_params.append(dict(
            w=w, b=b,
            gamma=jnp.ones((cout,), jnp.float32),
            beta=jnp.zeros((cout,), jnp.float32),
            mean=jnp.zeros((cout,), jnp.float32),
            var=jnp.ones((cout,), jnp.float32),
            padding=padding,
        ))
        L = -(-(L + 2 * padding - filter_size + 1) // 2)   # conv -> ceil pool
        prev_chanl = cout
    fc_size = prev_chanl * L
    key, kfc = jax.random.split(key)
    fc_w = xavier_uniform(kfc, (2, fc_size), fc_size, 2)   # regression_label=None -> 2 outputs
    fc_b = jnp.full((2,), 0.01, jnp.float32)               # m.bias.data.fill_(0.01)
    return dict(conv=conv_params, fc_w=fc_w, fc_b=fc_b)


# ----------------------------------------------------------------------------
if __name__ == "__main__":
    # Small config: layer_number=2, inplanes=4, input_size=(6, 16), batch=2.
    B, C_IN, L_IN = 2, 6, 16
    key = jax.random.PRNGKey(0)
    key, kx = jax.random.split(key)
    x = jax.random.normal(kx, (B, C_IN, L_IN), jnp.float32)

    params = build_params(key, layer_number=2, inplanes=4, in_length=L_IN)

    out = jax.block_until_ready(cnn1d_forward(params, x))
    ref = jax.block_until_ready(reference_forward(params, x))

    assert out.shape == (B, 2), out.shape
    # Looser tolerance because conv matmul operands are bf16 on the MXU.
    np.testing.assert_allclose(np.asarray(out), np.asarray(ref),
                               rtol=2e-2, atol=2e-2)
    print("KERNEL_OK")
</pallas_src>

<mosaic_0001>
module attributes {stable_mosaic.version = 11 : i64} {
  func.func @_fused_forward_kernel(%arg0: i32, %arg1: memref<2x16x6xf32, #tpu.memory_space<vmem>>, %arg2: memref<3x6x4xbf16, #tpu.memory_space<vmem>>, %arg3: memref<1x4xf32, #tpu.memory_space<vmem>>, %arg4: memref<3x4x8xbf16, #tpu.memory_space<vmem>>, %arg5: memref<1x8xf32, #tpu.memory_space<vmem>>, %arg6: memref<2x8x8xf32, #tpu.memory_space<vmem>>, %arg7: memref<1x2xf32, #tpu.memory_space<vmem>>, %arg8: memref<2x2xf32, #tpu.memory_space<vmem>>) attributes {dimension_semantics = [#tpu.dimension_semantics<parallel>], iteration_bounds = array<i64: 1>, scalar_prefetch = 0 : i64, scratch_operands = 0 : i64, tpu.core_type = #tpu.core_type<tc>, window_params = [{transform_indices = @transform_0, window_bounds = array<i64: 2, 16, 6>}, {pipeline_mode = #tpu.pipeline_mode<synchronous>, transform_indices = @transform_1, window_bounds = array<i64: 3, 6, 4>}, {pipeline_mode = #tpu.pipeline_mode<synchronous>, transform_indices = @transform_2, window_bounds = array<i64: 1, 4>}, {pipeline_mode = #tpu.pipeline_mode<synchronous>, transform_indices = @transform_3, window_bounds = array<i64: 3, 4, 8>}, {pipeline_mode = #tpu.pipeline_mode<synchronous>, transform_indices = @transform_4, window_bounds = array<i64: 1, 8>}, {pipeline_mode = #tpu.pipeline_mode<synchronous>, transform_indices = @transform_5, window_bounds = array<i64: 2, 8, 8>}, {pipeline_mode = #tpu.pipeline_mode<synchronous>, transform_indices = @transform_6, window_bounds = array<i64: 1, 2>}, {transform_indices = @transform_7, window_bounds = array<i64: 2, 2>}]} {
    %c0 = arith.constant 0 : index
    %c0_0 = arith.constant 0 : index
    %c0_1 = arith.constant 0 : index
    %0 = vector.load %arg1[%c0, %c0_0, %c0_1] : memref<2x16x6xf32, #tpu.memory_space<vmem>>, vector<2x16x6xf32>
    %cst = arith.constant 0.000000e+00 : f32
    %1 = vector.broadcast %cst : f32 to vector<2x1x6xf32>
    %2 = tpu.concatenate %1, %0, %1 in 1 : vector<2x1x6xf32>, vector<2x16x6xf32>, vector<2x1x6xf32> -> vector<2x18x6xf32>
    %3 = vector.extract_strided_slice %2 {offsets = [0, 0, 0], sizes = [2, 16, 6], strides = [1, 1, 1]} : vector<2x18x6xf32> to vector<2x16x6xf32>
    %4 = vector.shape_cast %3 : vector<2x16x6xf32> to vector<32x6xf32>
    %5 = arith.truncf %4 : vector<32x6xf32> to vector<32x6xbf16>
    %c0_2 = arith.constant 0 : index
    %c0_3 = arith.constant 0 : index
    %c0_4 = arith.constant 0 : index
    %6 = vector.load %arg2[%c0_2, %c0_3, %c0_4] : memref<3x6x4xbf16, #tpu.memory_space<vmem>>, vector<1x6x4xbf16>
    %7 = vector.shape_cast %6 : vector<1x6x4xbf16> to vector<6x4xbf16>
    %cst_5 = arith.constant dense<0.000000e+00> : vector<32x4xf32>
    %8 = tpu.matmul %5, %7, %cst_5 {dimension_numbers = #tpu.dot_dimension_numbers<[1], [0], [0], [1], [0, 0, 1, 1], [], []>} : vector<32x6xbf16>, vector<6x4xbf16>, vector<32x4xf32> -> vector<32x4xf32>
    %9 = vector.extract_strided_slice %2 {offsets = [0, 1, 0], sizes = [2, 16, 6], strides = [1, 1, 1]} : vector<2x18x6xf32> to vector<2x16x6xf32>
    %10 = vector.shape_cast %9 : vector<2x16x6xf32> to vector<32x6xf32>
    %11 = arith.truncf %10 : vector<32x6xf32> to vector<32x6xbf16>
    %c1 = arith.constant 1 : index
    %c0_6 = arith.constant 0 : index
    %c0_7 = arith.constant 0 : index
    %12 = vector.load %arg2[%c1, %c0_6, %c0_7] : memref<3x6x4xbf16, #tpu.memory_space<vmem>>, vector<1x6x4xbf16>
    %13 = vector.shape_cast %12 : vector<1x6x4xbf16> to vector<6x4xbf16>
    %cst_8 = arith.constant dense<0.000000e+00> : vector<32x4xf32>
    %14 = tpu.matmul %11, %13, %cst_8 {dimension_numbers = #tpu.dot_dimension_numbers<[1], [0], [0], [1], [0, 0, 1, 1], [], []>} : vector<32x6xbf16>, vector<6x4xbf16>, vector<32x4xf32> -> vector<32x4xf32>
    %15 = arith.addf %8, %14 : vector<32x4xf32>
    %16 = vector.extract_strided_slice %2 {offsets = [0, 2, 0], sizes = [2, 16, 6], strides = [1, 1, 1]} : vector<2x18x6xf32> to vector<2x16x6xf32>
    %17 = vector.shape_cast %16 : vector<2x16x6xf32> to vector<32x6xf32>
    %18 = arith.truncf %17 : vector<32x6xf32> to vector<32x6xbf16>
    %c2 = arith.constant 2 : index
    %c0_9 = arith.constant 0 : index
    %c0_10 = arith.constant 0 : index
    %19 = vector.load %arg2[%c2, %c0_9, %c0_10] : memref<3x6x4xbf16, #tpu.memory_space<vmem>>, vector<1x6x4xbf16>
    %20 = vector.shape_cast %19 : vector<1x6x4xbf16> to vector<6x4xbf16>
    %cst_11 = arith.constant dense<0.000000e+00> : vector<32x4xf32>
    %21 = tpu.matmul %18, %20, %cst_11 {dimension_numbers = #tpu.dot_dimension_numbers<[1], [0], [0], [1], [0, 0, 1, 1], [], []>} : vector<32x6xbf16>, vector<6x4xbf16>, vector<32x4xf32> -> vector<32x4xf32>
    %22 = arith.addf %15, %21 : vector<32x4xf32>
    %c0_12 = arith.constant 0 : index
    %c0_13 = arith.constant 0 : index
    %23 = vector.load %arg3[%c0_12, %c0_13] : memref<1x4xf32, #tpu.memory_space<vmem>>, vector<1x4xf32>
    %24 = vector.broadcast %23 : vector<1x4xf32> to vector<32x4xf32>
    %25 = arith.addf %22, %24 : vector<32x4xf32>
    %cst_14 = arith.constant 0.000000e+00 : f32
    %26 = vector.broadcast %cst_14 : f32 to vector<32x4xf32>
    %27 = arith.cmpf oge, %25, %26 : vector<32x4xf32>
    %cst_15 = arith.constant 0.00999999977 : f32
    %28 = vector.broadcast %cst_15 : f32 to vector<32x4xf32>
    %29 = arith.mulf %28, %25 : vector<32x4xf32>
    %30 = arith.select %27, %25, %29 : vector<32x4xi1>, vector<32x4xf32>
    %31 = vector.shape_cast %30 : vector<32x4xf32> to vector<16x2x4xf32>
    %cst_16 = arith.constant dense<0xFF800000> : vector<16x4xf32>
    %32 = vector.multi_reduction <maximumf>, %31, %cst_16 [1] : vector<16x2x4xf32> to vector<16x4xf32>
    %33 = vector.shape_cast %32 : vector<16x4xf32> to vector<2x8x4xf32>
    %cst_17 = arith.constant 0.000000e+00 : f32
    %34 = vector.broadcast %cst_17 : f32 to vector<2x1x4xf32>
    %35 = tpu.concatenate %34, %33, %34 in 1 : vector<2x1x4xf32>, vector<2x8x4xf32>, vector<2x1x4xf32> -> vector<2x10x4xf32>
    %36 = vector.extract_strided_slice %35 {offsets = [0, 0, 0], sizes = [2, 8, 4], strides = [1, 1, 1]} : vector<2x10x4xf32> to vector<2x8x4xf32>
    %37 = vector.shape_cast %36 : vector<2x8x4xf32> to vector<16x4xf32>
    %38 = arith.truncf %37 : vector<16x4xf32> to vector<16x4xbf16>
    %c0_18 = arith.constant 0 : index
    %c0_19 = arith.constant 0 : index
    %c0_20 = arith.constant 0 : index
    %39 = vector.load %arg4[%c0_18, %c0_19, %c0_20] : memref<3x4x8xbf16, #tpu.memory_space<vmem>>, vector<1x4x8xbf16>
    %40 = vector.shape_cast %39 : vector<1x4x8xbf16> to vector<4x8xbf16>
    %cst_21 = arith.constant dense<0.000000e+00> : vector<16x8xf32>
    %41 = tpu.matmul %38, %40, %cst_21 {dimension_numbers = #tpu.dot_dimension_numbers<[1], [0], [0], [1], [0, 0, 1, 1], [], []>} : vector<16x4xbf16>, vector<4x8xbf16>, vector<16x8xf32> -> vector<16x8xf32>
    %42 = vector.extract_strided_slice %35 {offsets = [0, 1, 0], sizes = [2, 8, 4], strides = [1, 1, 1]} : vector<2x10x4xf32> to vector<2x8x4xf32>
    %43 = vector.shape_cast %42 : vector<2x8x4xf32> to vector<16x4xf32>
    %44 = arith.truncf %43 : vector<16x4xf32> to vector<16x4xbf16>
    %c1_22 = arith.constant 1 : index
    %c0_23 = arith.constant 0 : index
    %c0_24 = arith.constant 0 : index
    %45 = vector.load %arg4[%c1_22, %c0_23, %c0_24] : memref<3x4x8xbf16, #tpu.memory_space<vmem>>, vector<1x4x8xbf16>
    %46 = vector.shape_cast %45 : vector<1x4x8xbf16> to vector<4x8xbf16>
    %cst_25 = arith.constant dense<0.000000e+00> : vector<16x8xf32>
    %47 = tpu.matmul %44, %46, %cst_25 {dimension_numbers = #tpu.dot_dimension_numbers<[1], [0], [0], [1], [0, 0, 1, 1], [], []>} : vector<16x4xbf16>, vector<4x8xbf16>, vector<16x8xf32> -> vector<16x8xf32>
    %48 = arith.addf %41, %47 : vector<16x8xf32>
    %49 = vector.extract_strided_slice %35 {offsets = [0, 2, 0], sizes = [2, 8, 4], strides = [1, 1, 1]} : vector<2x10x4xf32> to vector<2x8x4xf32>
    %50 = vector.shape_cast %49 : vector<2x8x4xf32> to vector<16x4xf32>
    %51 = arith.truncf %50 : vector<16x4xf32> to vector<16x4xbf16>
    %c2_26 = arith.constant 2 : index
    %c0_27 = arith.constant 0 : index
    %c0_28 = arith.constant 0 : index
    %52 = vector.load %arg4[%c2_26, %c0_27, %c0_28] : memref<3x4x8xbf16, #tpu.memory_space<vmem>>, vector<1x4x8xbf16>
    %53 = vector.shape_cast %52 : vector<1x4x8xbf16> to vector<4x8xbf16>
    %cst_29 = arith.constant dense<0.000000e+00> : vector<16x8xf32>
    %54 = tpu.matmul %51, %53, %cst_29 {dimension_numbers = #tpu.dot_dimension_numbers<[1], [0], [0], [1], [0, 0, 1, 1], [], []>} : vector<16x4xbf16>, vector<4x8xbf16>, vector<16x8xf32> -> vector<16x8xf32>
    %55 = arith.addf %48, %54 : vector<16x8xf32>
    %c0_30 = arith.constant 0 : index
    %c0_31 = arith.constant 0 : index
    %56 = vector.load %arg5[%c0_30, %c0_31] : memref<1x8xf32, #tpu.memory_space<vmem>>, vector<1x8xf32>
    %57 = vector.broadcast %56 : vector<1x8xf32> to vector<16x8xf32>
    %58 = arith.addf %55, %57 : vector<16x8xf32>
    %cst_32 = arith.constant 0.000000e+00 : f32
    %59 = vector.broadcast %cst_32 : f32 to vector<16x8xf32>
    %60 = arith.cmpf oge, %58, %59 : vector<16x8xf32>
    %cst_33 = arith.constant 0.00999999977 : f32
    %61 = vector.broadcast %cst_33 : f32 to vector<16x8xf32>
    %62 = arith.mulf %61, %58 : vector<16x8xf32>
    %63 = arith.select %60, %58, %62 : vector<16x8xi1>, vector<16x8xf32>
    %64 = vector.shape_cast %63 : vector<16x8xf32> to vector<8x2x8xf32>
    %cst_34 = arith.constant dense<0xFF800000> : vector<8x8xf32>
    %65 = vector.multi_reduction <maximumf>, %64, %cst_34 [1] : vector<8x2x8xf32> to vector<8x8xf32>
    %66 = vector.shape_cast %65 : vector<8x8xf32> to vector<2x4x8xf32>
    %67 = vector.shape_cast %66 : vector<2x4x8xf32> to vector<8x8xf32>
    %c0_35 = arith.constant 0 : index
    %c0_36 = arith.constant 0 : index
    %c0_37 = arith.constant 0 : index
    %68 = vector.load %arg6[%c0_35, %c0_36, %c0_37] : memref<2x8x8xf32, #tpu.memory_space<vmem>>, vector<1x8x8xf32>
    %69 = vector.shape_cast %68 : vector<1x8x8xf32> to vector<8x8xf32>
    %70 = arith.mulf %67, %69 : vector<8x8xf32>
    %cst_38 = arith.constant dense<0.000000e+00> : vector<8xf32>
    %71 = vector.multi_reduction <add>, %70, %cst_38 [1] : vector<8x8xf32> to vector<8xf32>
    %72 = vector.shape_cast %71 : vector<8xf32> to vector<8x1xf32>
    %73 = vector.shape_cast %72 : vector<8x1xf32> to vector<2x4x1xf32>
    %cst_39 = arith.constant dense<0.000000e+00> : vector<2x1xf32>
    %74 = vector.multi_reduction <add>, %73, %cst_39 [1] : vector<2x4x1xf32> to vector<2x1xf32>
    %c0_40 = arith.constant 0 : index
    %c0_41 = arith.constant 0 : index
    %75 = vector.load %arg7[%c0_40, %c0_41] : memref<1x2xf32, #tpu.memory_space<vmem>>, vector<1x1xf32>
    %76 = vector.broadcast %75 : vector<1x1xf32> to vector<2x1xf32>
    %77 = arith.addf %74, %76 : vector<2x1xf32>
    %c0_42 = arith.constant 0 : index
    %c0_43 = arith.constant 0 : index
    %78 = vector.load %arg8[%c0_42, %c0_43] : memref<2x2xf32, #tpu.memory_space<vmem>>, vector<2x1xf32>
    tpu.vector_store %arg8[%c0_42, %c0_43], %77 {strides = array<i32>} : memref<2x2xf32, #tpu.memory_space<vmem>>, vector<2x1xf32>,
    %c1_44 = arith.constant 1 : index
    %c0_45 = arith.constant 0 : index
    %c0_46 = arith.constant 0 : index
    %79 = vector.load %arg6[%c1_44, %c0_45, %c0_46] : memref<2x8x8xf32, #tpu.memory_space<vmem>>, vector<1x8x8xf32>
    %80 = vector.shape_cast %79 : vector<1x8x8xf32> to vector<8x8xf32>
    %81 = arith.mulf %67, %80 : vector<8x8xf32>
    %cst_47 = arith.constant dense<0.000000e+00> : vector<8xf32>
    %82 = vector.multi_reduction <add>, %81, %cst_47 [1] : vector<8x8xf32> to vector<8xf32>
    %83 = vector.shape_cast %82 : vector<8xf32> to vector<8x1xf32>
    %84 = vector.shape_cast %83 : vector<8x1xf32> to vector<2x4x1xf32>
    %cst_48 = arith.constant dense<0.000000e+00> : vector<2x1xf32>
    %85 = vector.multi_reduction <add>, %84, %cst_48 [1] : vector<2x4x1xf32> to vector<2x1xf32>
    %c0_49 = arith.constant 0 : index
    %c1_50 = arith.constant 1 : index
    %86 = vector.load %arg7[%c0_49, %c1_50] : memref<1x2xf32, #tpu.memory_space<vmem>>, vector<1x1xf32>
    %87 = vector.broadcast %86 : vector<1x1xf32> to vector<2x1xf32>
    %88 = arith.addf %85, %87 : vector<2x1xf32>
    %c0_51 = arith.constant 0 : index
    %c1_52 = arith.constant 1 : index
    %89 = vector.load %arg8[%c0_51, %c1_52] : memref<2x2xf32, #tpu.memory_space<vmem>>, vector<2x1xf32>
    tpu.vector_store %arg8[%c0_51, %c1_52], %88 {strides = array<i32>} : memref<2x2xf32, #tpu.memory_space<vmem>>, vector<2x1xf32>,
    return
  }
  func.func @transform_0(%arg0: i32) -> (i32, i32, i32) {
    %c0_i32 = arith.constant 0 : i32
    %c0_i32_0 = arith.constant 0 : i32
    %c0_i32_1 = arith.constant 0 : i32
    return %arg0, %c0_i32, %c0_i32_0 : i32, i32, i32
  }
  func.func @transform_1(%arg0: i32) -> (i32, i32, i32) {
    %c0_i32 = arith.constant 0 : i32
    %c0_i32_0 = arith.constant 0 : i32
    %c0_i32_1 = arith.constant 0 : i32
    %c0_i32_2 = arith.constant 0 : i32
    return %c0_i32, %c0_i32_0, %c0_i32_1 : i32, i32, i32
  }
  func.func @transform_2(%arg0: i32) -> (i32, i32) {
    %c0_i32 = arith.constant 0 : i32
    %c0_i32_0 = arith.constant 0 : i32
    %c0_i32_1 = arith.constant 0 : i32
    return %c0_i32, %c0_i32_0 : i32, i32
  }
  func.func @transform_3(%arg0: i32) -> (i32, i32, i32) {
    %c0_i32 = arith.constant 0 : i32
    %c0_i32_0 = arith.constant 0 : i32
    %c0_i32_1 = arith.constant 0 : i32
    %c0_i32_2 = arith.constant 0 : i32
    return %c0_i32, %c0_i32_0, %c0_i32_1 : i32, i32, i32
  }
  func.func @transform_4(%arg0: i32) -> (i32, i32) {
    %c0_i32 = arith.constant 0 : i32
    %c0_i32_0 = arith.constant 0 : i32
    %c0_i32_1 = arith.constant 0 : i32
    return %c0_i32, %c0_i32_0 : i32, i32
  }
  func.func @transform_5(%arg0: i32) -> (i32, i32, i32) {
    %c0_i32 = arith.constant 0 : i32
    %c0_i32_0 = arith.constant 0 : i32
    %c0_i32_1 = arith.constant 0 : i32
    %c0_i32_2 = arith.constant 0 : i32
    return %c0_i32, %c0_i32_0, %c0_i32_1 : i32, i32, i32
  }
  func.func @transform_6(%arg0: i32) -> (i32, i32) {
    %c0_i32 = arith.constant 0 : i32
    %c0_i32_0 = arith.constant 0 : i32
    %c0_i32_1 = arith.constant 0 : i32
    return %c0_i32, %c0_i32_0 : i32, i32
  }
  func.func @transform_7(%arg0: i32) -> (i32, i32) {
    %c0_i32 = arith.constant 0 : i32
    %c0_i32_0 = arith.constant 0 : i32
    return %arg0, %c0_i32 : i32, i32
  }
}

</mosaic_0001>

<llo_original>
// kernel: tpu_custom_call.1
$region0: #{tpu_custom_call.1}
  #allocation0 [shape = 'u32[]', space=smem, size = 0x4, offset = 0x4, fixed_abs, tag = 'smem constant byte address 0x4 - core index']
  #allocation1 [shape = 'u32[144,128]{1,0:T(1,128)}', space=vmem, size = 0x12000, scoped, tag = 'internal scratch']
  %s0 = inlined_call_operand.vmem [shape: f32[2,16,6], index: 0, kind: input, shape index: {}]
  %s1 = inlined_call_operand.vmem [shape: bf16[3,6,4], index: 1, kind: input, shape index: {}]
  %s2 = inlined_call_operand.vmem [shape: f32[1,4], index: 2, kind: input, shape index: {}]
  %s3 = inlined_call_operand.vmem [shape: bf16[3,4,8], index: 3, kind: input, shape index: {}]
  %s4 = inlined_call_operand.vmem [shape: f32[1,8], index: 4, kind: input, shape index: {}]
  %s5 = inlined_call_operand.vmem [shape: f32[2,8,8], index: 5, kind: input, shape index: {}]
  %s6 = inlined_call_operand.vmem [shape: f32[1,2], index: 6, kind: input, shape index: {}]
  %s7 = inlined_call_operand.hbm [shape: f32[2,2], index: 7, kind: output, shape index: {}]
  %s8 = sld [smem:[#allocation0]]
  $region38: #{tpu_custom_call.1} parent=0
    _
  %s10 = ssub.s32 1, %s8
  %s11 = scalar_select 0, %s10, %s8
  $region1: #{tpu_custom_call.1} parent=0
    #allocation2 [shape = 'u8[1024]{0}', space=vmem, size = 0x400, scoped, tag = 'output window, operand 0, single buffered']
    #allocation3 [shape = 's32[1]{0}', space=sflag, size = 0x4, scoped, tag = 'scoped memory for tpu_custom_call.1']
    %12 = vsyncpa [#allocation3], 0
    // Predicated region
    $region2: #{tpu_custom_call.1} parent=1 // pred_check
      _
    $region3: #{tpu_custom_call.1} parent=1 // pred_check_branch
      %14 = sbr.rel (0) target = $region5
    $region4: #{tpu_custom_call.1} parent=1 // pred_region
      _
    $region5: #{tpu_custom_call.1} parent=1 // pred_fallthru
      _
    // Predicated region
    $region6: #{tpu_custom_call.1} parent=1 // pred_check
      _
    $region7: #{tpu_custom_call.1} parent=1 // pred_check_branch
      %16 = sbr.rel (0) target = $region9
    $region8: #{tpu_custom_call.1} parent=1 // pred_region
      _
    $region9: #{tpu_custom_call.1} parent=1 // pred_fallthru
      _
    // Predicated region
    $region10: #{tpu_custom_call.1} parent=1 // pred_check
      _
    $region11: #{tpu_custom_call.1} parent=1 // pred_check_branch
      %18 = sbr.rel (0) target = $region13
    $region12: #{tpu_custom_call.1} parent=1 // pred_region
      _
    $region13: #{tpu_custom_call.1} parent=1 // pred_fallthru
      _
    // Predicated region
    $region14: #{tpu_custom_call.1} parent=1 // pred_check
      _
    $region15: #{tpu_custom_call.1} parent=1 // pred_check_branch
      %20 = sbr.rel (0) target = $region17
    $region16: #{tpu_custom_call.1} parent=1 // pred_region
      _
    $region17: #{tpu_custom_call.1} parent=1 // pred_fallthru
      _
    // Predicated region
    $region18: #{tpu_custom_call.1} parent=1 // pred_check
      _
    $region19: #{tpu_custom_call.1} parent=1 // pred_check_branch
      %22 = sbr.rel (0) target = $region21
    $region20: #{tpu_custom_call.1} parent=1 // pred_region
      _
    $region21: #{tpu_custom_call.1} parent=1 // pred_fallthru
      _
    // Predicated region
    $region22: #{tpu_custom_call.1} parent=1 // pred_check
      _
    $region23: #{tpu_custom_call.1} parent=1 // pred_check_branch
      %24 = sbr.rel (0) target = $region25
    $region24: #{tpu_custom_call.1} parent=1 // pred_region
      _
    $region25: #{tpu_custom_call.1} parent=1 // pred_fallthru
      _
    // Predicated region
    $region26: #{tpu_custom_call.1} parent=1 // pred_check
      _
    $region27: #{tpu_custom_call.1} parent=1 // pred_check_branch
      %26 = sbr.rel (0) target = $region29
    $region28: #{tpu_custom_call.1} parent=1 // pred_region
      _
    $region29: #{tpu_custom_call.1} parent=1 // pred_fallthru
      _
    %v28 = vld [vmem:[%s0] sm:$0xff]
    %v29 = vld [vmem:[%s0 + $0x8] sm:$0xff]
    %v30 = vld [vmem:[%s0 + $0x10] sm:$0xff]
    %v31 = vld [vmem:[%s0 + $0x18] sm:$0xff]
    %vm36 = vcmask 1040384
    %v37 = vrot.slane %v28, 7
    %v38 = vrot.slane %v29, 7
    %v39 = vsel %vm36, %v37, %v38
    %v40 = vrot.slane %v30, 7
    %v41 = vrot.slane %v31, 7
    %v42 = vsel %vm36, %v40, %v41
    %v49 = vsel %vm36, 0.0, %v37
    %v50 = vsel %vm36, 0.0, %v40
    %v51 = vsel %vm36, %v38, 0.0
    %v52 = vsel %vm36, %v41, 0.0
    %v53 = vpack.c.bf16 %v39, %v49
    %v54 = vpack.c.bf16 %v42, %v50
    %v55 = vld [vmem:[%s1] sm:$0x7]
    %vm60 = vcmask 1046528
    %v61 = vrot.slane %v49, 1
    %v62 = vrot.slane %v39, 1
    %v63 = vsel %vm60, %v61, %v62
    %v64 = vrot.slane %v51, 1
    %v65 = vsel %vm60, %v62, %v64
    %v66 = vrot.slane %v50, 1
    %v67 = vrot.slane %v42, 1
    %v68 = vsel %vm60, %v66, %v67
    %v69 = vrot.slane %v52, 1
    %v70 = vsel %vm60, %v67, %v69
    %v75 = vpack.c.bf16 %v65, %v63
    %v76 = vpack.c.bf16 %v70, %v68
    %s77 = scalar_lea.vmem %s1, 4
    %v78 = vld [vmem:[%s77] sm:$0x7]
    %vm79 = vcmask 48128
    %v81 = vsel %vm79, %v75, 0
    %v84 = vsel %vm79, %v76, 0
    %vm86 = vcmask 1042432
    %v88 = vsel %vm86, %v78, 0
    %90 = vmatprep.subr.bf16.mxu0 0
    %91 = vmatpush1.bf16.msra.mxu0 %v88
    %92 = vmatprep.subr.bf16.mxu0 0
    %93 = vmatpush1.bf16.msra.mxu0 0
    %94 = vmatprep.subr.bf16.mxu0 0
    %95 = vmatpush1.bf16.msra.mxu0 0
    %96 = vmatprep.subr.bf16.mxu0 0
    %97 = vmatpush1.bf16.msra.mxu0 0
    %98 = vmatprep.subr.bf16.mxu0 0
    %99 = vmatpush1.bf16.msra.mxu0 0
    %100 = vmatprep.subr.bf16.mxu0 0
    %101 = vmatpush1.bf16.msra.mxu0 0
    %102 = vmatprep.subr.bf16.mxu0 0
    %103 = vmatpush1.bf16.msra.mxu0 0
    %104 = vmatprep.subr.bf16.mxu0 0
    %105 = vmatpush1.bf16.msra.mxu0 0
    %106 = vmatprep.subr.bf16.mxu0 0
    %107 = vmatpush1.bf16.msra.mxu0 0
    %108 = vmatprep.subr.bf16.mxu0 0
    %109 = vmatpush1.bf16.msra.mxu0 0
    %110 = vmatprep.subr.bf16.mxu0 0
    %111 = vmatpush1.bf16.msra.mxu0 0
    %112 = vmatprep.subr.bf16.mxu0 0
    %113 = vmatpush1.bf16.msra.mxu0 0
    %114 = vmatprep.subr.bf16.mxu0 0
    %115 = vmatpush1.bf16.msra.mxu0 0
    %116 = vmatprep.subr.bf16.mxu0 0
    %117 = vmatpush1.bf16.msra.mxu0 0
    %118 = vmatprep.subr.bf16.mxu0 0
    %119 = vmatpush1.bf16.msra.mxu0 0
    %120 = vmatprep.subr.bf16.mxu0 0
    %121 = vmatpush1.bf16.msra.mxu0 0
    %122 = vmatprep.mubr.bf16.mxu0 0
    %123 = vmatmul.mubr.bf16.gmra.mrb[0].mxu0 %v81
    %v124 = vpop.f32.mrb[0].mxu0
    %v125 = vadd.f32 0.0, %v124
    %v126 = vpop.f32.mrb[0].mxu0
    %v127 = vpop.f32.mrb[0].mxu0
    %v128 = vadd.f32 0.0, %v127
    %v129 = vpop.f32.mrb[0].mxu0
    %130 = vmatprep.mubr.bf16.mxu0 0
    %131 = vmatmul.mubr.bf16.gmra.mrb[0].mxu0 %v84
    %v132 = vpop.f32.mrb[0].mxu0
    %v133 = vadd.f32 0.0, %v132
    %v134 = vpop.f32.mrb[0].mxu0
    %v135 = vpop.f32.mrb[0].mxu0
    %v136 = vadd.f32 0.0, %v135
    %v137 = vpop.f32.mrb[0].mxu0
    %138 = vdwg.mxu0
    %v140 = vsel %vm79, %v53, 0
    %v143 = vsel %vm79, %v54, 0
    %v146 = vsel %vm86, %v55, 0
    %148 = vmatprep.subr.bf16.mxu0 0
    %149 = vmatpush1.bf16.msra.mxu0 %v146
    %150 = vmatprep.subr.bf16.mxu0 0
    %151 = vmatpush1.bf16.msra.mxu0 0
    %152 = vmatprep.subr.bf16.mxu0 0
    %153 = vmatpush1.bf16.msra.mxu0 0
    %154 = vmatprep.subr.bf16.mxu0 0
    %155 = vmatpush1.bf16.msra.mxu0 0
    %156 = vmatprep.subr.bf16.mxu0 0
    %157 = vmatpush1.bf16.msra.mxu0 0
    %158 = vmatprep.subr.bf16.mxu0 0
    %159 = vmatpush1.bf16.msra.mxu0 0
    %160 = vmatprep.subr.bf16.mxu0 0
    %161 = vmatpush1.bf16.msra.mxu0 0
    %162 = vmatprep.subr.bf16.mxu0 0
    %163 = vmatpush1.bf16.msra.mxu0 0
    %164 = vmatprep.subr.bf16.mxu0 0
    %165 = vmatpush1.bf16.msra.mxu0 0
    %166 = vmatprep.subr.bf16.mxu0 0
    %167 = vmatpush1.bf16.msra.mxu0 0
    %168 = vmatprep.subr.bf16.mxu0 0
    %169 = vmatpush1.bf16.msra.mxu0 0
    %170 = vmatprep.subr.bf16.mxu0 0
    %171 = vmatpush1.bf16.msra.mxu0 0
    %172 = vmatprep.subr.bf16.mxu0 0
    %173 = vmatpush1.bf16.msra.mxu0 0
    %174 = vmatprep.subr.bf16.mxu0 0
    %175 = vmatpush1.bf16.msra.mxu0 0
    %176 = vmatprep.subr.bf16.mxu0 0
    %177 = vmatpush1.bf16.msra.mxu0 0
    %178 = vmatprep.subr.bf16.mxu0 0
    %179 = vmatpush1.bf16.msra.mxu0 0
    %180 = vmatprep.mubr.bf16.mxu0 0
    %181 = vmatmul.mubr.bf16.gmra.mrb[0].mxu0 %v140
    %v182 = vpop.f32.mrb[0].mxu0
    %v183 = vadd.f32 %v125, %v182
    %v184 = vpop.f32.mrb[0].mxu0
    %v185 = vpop.f32.mrb[0].mxu0
    %v186 = vadd.f32 %v128, %v185
    %v187 = vpop.f32.mrb[0].mxu0
    %188 = vmatprep.mubr.bf16.mxu0 0
    %189 = vmatmul.mubr.bf16.gmra.mrb[0].mxu0 %v143
    %v190 = vpop.f32.mrb[0].mxu0
    %v191 = vadd.f32 %v133, %v190
    %v192 = vpop.f32.mrb[0].mxu0
    %v193 = vpop.f32.mrb[0].mxu0
    %v194 = vadd.f32 %v136, %v193
    %v195 = vpop.f32.mrb[0].mxu0
    %196 = vdwg.mxu0
    %vm197 = vcmask 1045504
    %v198 = vrot.slane %v49, 2
    %v199 = vrot.slane %v39, 2
    %v200 = vsel %vm197, %v198, %v199
    %v201 = vrot.slane %v51, 2
    %v202 = vsel %vm197, %v199, %v201
    %v203 = vrot.slane %v50, 2
    %v204 = vrot.slane %v42, 2
    %v205 = vsel %vm197, %v203, %v204
    %v206 = vrot.slane %v52, 2
    %v207 = vsel %vm197, %v204, %v206
    %v212 = vpack.c.bf16 %v202, %v200
    %v213 = vpack.c.bf16 %v207, %v205
    %s214 = scalar_lea.vmem %s1, 8
    %v215 = vld [vmem:[%s214] sm:$0x7]
    %v217 = vsel %vm79, %v212, 0
    %v220 = vsel %vm79, %v213, 0
    %v223 = vsel %vm86, %v215, 0
    %225 = vmatprep.subr.bf16.mxu0 0
    %226 = vmatpush1.bf16.msra.mxu0 %v223
    %227 = vmatprep.subr.bf16.mxu0 0
    %228 = vmatpush1.bf16.msra.mxu0 0
    %229 = vmatprep.subr.bf16.mxu0 0
    %230 = vmatpush1.bf16.msra.mxu0 0
    %231 = vmatprep.subr.bf16.mxu0 0
    %232 = vmatpush1.bf16.msra.mxu0 0
    %233 = vmatprep.subr.bf16.mxu0 0
    %234 = vmatpush1.bf16.msra.mxu0 0
    %235 = vmatprep.subr.bf16.mxu0 0
    %236 = vmatpush1.bf16.msra.mxu0 0
    %237 = vmatprep.subr.bf16.mxu0 0
    %238 = vmatpush1.bf16.msra.mxu0 0
    %239 = vmatprep.subr.bf16.mxu0 0
    %240 = vmatpush1.bf16.msra.mxu0 0
    %241 = vmatprep.subr.bf16.mxu0 0
    %242 = vmatpush1.bf16.msra.mxu0 0
    %243 = vmatprep.subr.bf16.mxu0 0
    %244 = vmatpush1.bf16.msra.mxu0 0
    %245 = vmatprep.subr.bf16.mxu0 0
    %246 = vmatpush1.bf16.msra.mxu0 0
    %247 = vmatprep.subr.bf16.mxu0 0
    %248 = vmatpush1.bf16.msra.mxu0 0
    %249 = vmatprep.subr.bf16.mxu0 0
    %250 = vmatpush1.bf16.msra.mxu0 0
    %251 = vmatprep.subr.bf16.mxu0 0
    %252 = vmatpush1.bf16.msra.mxu0 0
    %253 = vmatprep.subr.bf16.mxu0 0
    %254 = vmatpush1.bf16.msra.mxu0 0
    %255 = vmatprep.subr.bf16.mxu0 0
    %256 = vmatpush1.bf16.msra.mxu0 0
    %257 = vmatprep.mubr.bf16.mxu0 0
    %258 = vmatmul.mubr.bf16.gmra.mrb[0].mxu0 %v217
    %v259 = vpop.f32.mrb[0].mxu0
    %v260 = vadd.f32 0.0, %v259
    %v261 = vpop.f32.mrb[0].mxu0
    %v262 = vpop.f32.mrb[0].mxu0
    %v263 = vadd.f32 0.0, %v262
    %v264 = vpop.f32.mrb[0].mxu0
    %265 = vmatprep.mubr.bf16.mxu0 0
    %266 = vmatmul.mubr.bf16.gmra.mrb[0].mxu0 %v220
    %v267 = vpop.f32.mrb[0].mxu0
    %v268 = vadd.f32 0.0, %v267
    %v269 = vpop.f32.mrb[0].mxu0
    %v270 = vpop.f32.mrb[0].mxu0
    %v271 = vadd.f32 0.0, %v270
    %v272 = vpop.f32.mrb[0].mxu0
    %273 = vdwg.mxu0
    %v274 = vadd.f32 %v183, %v260
    %v275 = vadd.f32 %v186, %v263
    %v276 = vadd.f32 %v191, %v268
    %v277 = vadd.f32 %v194, %v271
    %v278 = vld [vmem:[%s2] sm:$0x1]
    %v280 = vlaneseq
    %v281 = vshrl.u32 %v280, 7
    %v282 = vsub.s32 0, %v281
    %v283 = vrot.slane %v278, %v282
    %v285 = vadd.f32 %v274, %v283
    %v286 = vadd.f32 %v275, %v283
    %v287 = vadd.f32 %v276, %v283
    %v288 = vadd.f32 %v277, %v283
    %vm289 = vcmp.ge.f32.partialorder %v285, 0.0
    %vm290 = vcmp.ge.f32.partialorder %v286, 0.0
    %vm291 = vcmp.ge.f32.partialorder %v287, 0.0
    %vm292 = vcmp.ge.f32.partialorder %v288, 0.0
    %v293 = vmul.f32 %v285, 0.01
    %v294 = vmul.f32 %v286, 0.01
    %v295 = vmul.f32 %v287, 0.01
    %v296 = vmul.f32 %v288, 0.01
    %v297 = vsel %vm289, %v285, %v293
    %v298 = vsel %vm290, %v286, %v294
    %v299 = vsel %vm291, %v287, %v295
    %v300 = vsel %vm292, %v288, %v296
    %v305 = vcombine.high %v297, %v297
    %v307 = vunpack.c.l.s4 1983009808
    %v308 = vunpack.c.0.s8 %v307
    %v309 = vlaneseq
    %v310 = vshrl.u32 %v309, 7
    %v311 = vsub.s32 %v308, %v310
    %v312 = vrot.slane %v297, %v311
    %v314 = vunpack.c.l.s4 1983009808
    %v315 = vunpack.c.0.s8 %v314
    %v316 = vlaneseq
    %v317 = vshrl.u32 %v316, 7
    %v318 = vsub.s32 %v315, %v317
    %v319 = vrot.slane %v305, %v318
    %v320 = vcombine.high %v312, %v312
    %v321 = vcombine.high %v319, %v319
    %v322 = vcombine.high %v298, %v298
    %v324 = vunpack.c.l.s4 1983009808
    %v325 = vunpack.c.0.s8 %v324
    %v326 = vlaneseq
    %v327 = vshrl.u32 %v326, 7
    %v328 = vsub.s32 %v325, %v327
    %v329 = vrot.slane %v298, %v328
    %v331 = vunpack.c.l.s4 1983009808
    %v332 = vunpack.c.0.s8 %v331
    %v333 = vlaneseq
    %v334 = vshrl.u32 %v333, 7
    %v335 = vsub.s32 %v332, %v334
    %v336 = vrot.slane %v322, %v335
    %v337 = vcombine.high %v329, %v329
    %v338 = vcombine.high %v336, %v336
    %v339 = vcombine.high %v299, %v299
    %v341 = vunpack.c.l.s4 1983009808
    %v342 = vunpack.c.0.s8 %v341
    %v343 = vlaneseq
    %v344 = vshrl.u32 %v343, 7
    %v345 = vsub.s32 %v342, %v344
    %v346 = vrot.slane %v299, %v345
    %v348 = vunpack.c.l.s4 1983009808
    %v349 = vunpack.c.0.s8 %v348
    %v350 = vlaneseq
    %v351 = vshrl.u32 %v350, 7
    %v352 = vsub.s32 %v349, %v351
    %v353 = vrot.slane %v339, %v352
    %v354 = vcombine.high %v346, %v346
    %v355 = vcombine.high %v353, %v353
    %v356 = vcombine.high %v300, %v300
    %v358 = vunpack.c.l.s4 1983009808
    %v359 = vunpack.c.0.s8 %v358
    %v360 = vlaneseq
    %v361 = vshrl.u32 %v360, 7
    %v362 = vsub.s32 %v359, %v361
    %v363 = vrot.slane %v300, %v362
    %v365 = vunpack.c.l.s4 1983009808
    %v366 = vunpack.c.0.s8 %v365
    %v367 = vlaneseq
    %v368 = vshrl.u32 %v367, 7
    %v369 = vsub.s32 %v366, %v368
    %v370 = vrot.slane %v356, %v369
    %v371 = vcombine.high %v363, %v363
    %v372 = vcombine.high %v370, %v370
    %vm389 = vcmask 25600
    %v390 = vsel %vm389, %v312, -inf
    %v391 = vrot.slane %v390, 4
    %v392 = vmax.f32 %v390, %v391
    %v393 = vrot.slane %v392, 2
    %v394 = vmax.f32 %v392, %v393
    %v395 = vrot.slane %v394, 1
    %v396 = vmax.f32 %v394, %v395
    %v397 = vsel %vm389, %v320, -inf
    %v398 = vrot.slane %v397, 4
    %v399 = vmax.f32 %v397, %v398
    %v400 = vrot.slane %v399, 2
    %v401 = vmax.f32 %v399, %v400
    %v402 = vrot.slane %v401, 1
    %v403 = vmax.f32 %v401, %v402
    %v404 = vsel %vm389, %v319, -inf
    %v405 = vrot.slane %v404, 4
    %v406 = vmax.f32 %v404, %v405
    %v407 = vrot.slane %v406, 2
    %v408 = vmax.f32 %v406, %v407
    %v409 = vrot.slane %v408, 1
    %v410 = vmax.f32 %v408, %v409
    %v411 = vsel %vm389, %v321, -inf
    %v412 = vrot.slane %v411, 4
    %v413 = vmax.f32 %v411, %v412
    %v414 = vrot.slane %v413, 2
    %v415 = vmax.f32 %v413, %v414
    %v416 = vrot.slane %v415, 1
    %v417 = vmax.f32 %v415, %v416
    %v418 = vsel %vm389, %v329, -inf
    %v419 = vrot.slane %v418, 4
    %v420 = vmax.f32 %v418, %v419
    %v421 = vrot.slane %v420, 2
    %v422 = vmax.f32 %v420, %v421
    %v423 = vrot.slane %v422, 1
    %v424 = vmax.f32 %v422, %v423
    %v425 = vsel %vm389, %v337, -inf
    %v426 = vrot.slane %v425, 4
    %v427 = vmax.f32 %v425, %v426
    %v428 = vrot.slane %v427, 2
    %v429 = vmax.f32 %v427, %v428
    %v430 = vrot.slane %v429, 1
    %v431 = vmax.f32 %v429, %v430
    %v432 = vsel %vm389, %v336, -inf
    %v433 = vrot.slane %v432, 4
    %v434 = vmax.f32 %v432, %v433
    %v435 = vrot.slane %v434, 2
    %v436 = vmax.f32 %v434, %v435
    %v437 = vrot.slane %v436, 1
    %v438 = vmax.f32 %v436, %v437
    %v439 = vsel %vm389, %v338, -inf
    %v440 = vrot.slane %v439, 4
    %v441 = vmax.f32 %v439, %v440
    %v442 = vrot.slane %v441, 2
    %v443 = vmax.f32 %v441, %v442
    %v444 = vrot.slane %v443, 1
    %v445 = vmax.f32 %v443, %v444
    %v446 = vsel %vm389, %v346, -inf
    %v447 = vrot.slane %v446, 4
    %v448 = vmax.f32 %v446, %v447
    %v449 = vrot.slane %v448, 2
    %v450 = vmax.f32 %v448, %v449
    %v451 = vrot.slane %v450, 1
    %v452 = vmax.f32 %v450, %v451
    %v453 = vsel %vm389, %v354, -inf
    %v454 = vrot.slane %v453, 4
    %v455 = vmax.f32 %v453, %v454
    %v456 = vrot.slane %v455, 2
    %v457 = vmax.f32 %v455, %v456
    %v458 = vrot.slane %v457, 1
    %v459 = vmax.f32 %v457, %v458
    %v460 = vsel %vm389, %v353, -inf
    %v461 = vrot.slane %v460, 4
    %v462 = vmax.f32 %v460, %v461
    %v463 = vrot.slane %v462, 2
    %v464 = vmax.f32 %v462, %v463
    %v465 = vrot.slane %v464, 1
    %v466 = vmax.f32 %v464, %v465
    %v467 = vsel %vm389, %v355, -inf
    %v468 = vrot.slane %v467, 4
    %v469 = vmax.f32 %v467, %v468
    %v470 = vrot.slane %v469, 2
    %v471 = vmax.f32 %v469, %v470
    %v472 = vrot.slane %v471, 1
    %v473 = vmax.f32 %v471, %v472
    %v474 = vsel %vm389, %v363, -inf
    %v475 = vrot.slane %v474, 4
    %v476 = vmax.f32 %v474, %v475
    %v477 = vrot.slane %v476, 2
    %v478 = vmax.f32 %v476, %v477
    %v479 = vrot.slane %v478, 1
    %v480 = vmax.f32 %v478, %v479
    %v481 = vsel %vm389, %v371, -inf
    %v482 = vrot.slane %v481, 4
    %v483 = vmax.f32 %v481, %v482
    %v484 = vrot.slane %v483, 2
    %v485 = vmax.f32 %v483, %v484
    %v486 = vrot.slane %v485, 1
    %v487 = vmax.f32 %v485, %v486
    %v488 = vsel %vm389, %v370, -inf
    %v489 = vrot.slane %v488, 4
    %v490 = vmax.f32 %v488, %v489
    %v491 = vrot.slane %v490, 2
    %v492 = vmax.f32 %v490, %v491
    %v493 = vrot.slane %v492, 1
    %v494 = vmax.f32 %v492, %v493
    %v495 = vsel %vm389, %v372, -inf
    %v496 = vrot.slane %v495, 4
    %v497 = vmax.f32 %v495, %v496
    %v498 = vrot.slane %v497, 2
    %v499 = vmax.f32 %v497, %v498
    %v500 = vrot.slane %v499, 1
    %v501 = vmax.f32 %v499, %v500
    %vm518 = vcmask 1042434
    %v519 = vsel %vm518, %v403, %v396
    %vm520 = vcmask 1043459
    %v521 = vsel %vm520, %v410, %v519
    %vm522 = vcmask 1044484
    %v523 = vsel %vm522, %v417, %v521
    %vm524 = vcmask 1045509
    %v525 = vsel %vm524, %v424, %v523
    %vm526 = vcmask 1046534
    %v527 = vsel %vm526, %v431, %v525
    %vm528 = vcmask 1047559
    %v529 = vsel %vm528, %v438, %v527
    %v530 = vsel %vm518, %v459, %v452
    %v531 = vsel %vm520, %v466, %v530
    %v532 = vsel %vm522, %v473, %v531
    %v533 = vsel %vm524, %v480, %v532
    %v534 = vsel %vm526, %v487, %v533
    %v535 = vsel %vm528, %v494, %v534
    %v540 = vsel %vm36, 0.0, %v529
    %v541 = vsel %vm36, 0.0, %v535
    %v542 = vsel %vm36, %v445, 0.0
    %v543 = vsel %vm36, %v501, 0.0
    %v544 = vpack.c.bf16 %v541, %v540
    %v545 = vld [vmem:[%s3] sm:$0x3]
    %v550 = vrot.slane %v540, 1
    %v551 = vrot.slane %v542, 1
    %v552 = vsel %vm60, %v550, %v551
    %v553 = vrot.slane %v541, 1
    %v554 = vrot.slane %v543, 1
    %v555 = vsel %vm60, %v553, %v554
    %v558 = vpack.c.bf16 %v555, %v552
    %s559 = scalar_lea.vmem %s3, 2
    %v560 = vld [vmem:[%s559] sm:$0x3]
    %vm561 = vcmask 31744
    %v563 = vsel %vm561, %v558, 0
    %vm565 = vcmask 1041408
    %v567 = vsel %vm565, %v560, 0
    %569 = vmatprep.subr.bf16.mxu0 0
    %570 = vmatpush1.bf16.msra.mxu0 %v567
    %571 = vmatprep.subr.bf16.mxu0 0
    %572 = vmatpush1.bf16.msra.mxu0 0
    %573 = vmatprep.subr.bf16.mxu0 0
    %574 = vmatpush1.bf16.msra.mxu0 0
    %575 = vmatprep.subr.bf16.mxu0 0
    %576 = vmatpush1.bf16.msra.mxu0 0
    %577 = vmatprep.subr.bf16.mxu0 0
    %578 = vmatpush1.bf16.msra.mxu0 0
    %579 = vmatprep.subr.bf16.mxu0 0
    %580 = vmatpush1.bf16.msra.mxu0 0
    %581 = vmatprep.subr.bf16.mxu0 0
    %582 = vmatpush1.bf16.msra.mxu0 0
    %583 = vmatprep.subr.bf16.mxu0 0
    %584 = vmatpush1.bf16.msra.mxu0 0
    %585 = vmatprep.subr.bf16.mxu0 0
    %586 = vmatpush1.bf16.msra.mxu0 0
    %587 = vmatprep.subr.bf16.mxu0 0
    %588 = vmatpush1.bf16.msra.mxu0 0
    %589 = vmatprep.subr.bf16.mxu0 0
    %590 = vmatpush1.bf16.msra.mxu0 0
    %591 = vmatprep.subr.bf16.mxu0 0
    %592 = vmatpush1.bf16.msra.mxu0 0
    %593 = vmatprep.subr.bf16.mxu0 0
    %594 = vmatpush1.bf16.msra.mxu0 0
    %595 = vmatprep.subr.bf16.mxu0 0
    %596 = vmatpush1.bf16.msra.mxu0 0
    %597 = vmatprep.subr.bf16.mxu0 0
    %598 = vmatpush1.bf16.msra.mxu0 0
    %599 = vmatprep.subr.bf16.mxu0 0
    %600 = vmatpush1.bf16.msra.mxu0 0
    %601 = vmatprep.mubr.bf16.mxu0 0
    %602 = vmatmul.mubr.bf16.gmra.mrb[0].mxu0 %v563
    %v603 = vpop.f32.mrb[0].mxu0
    %v604 = vadd.f32 0.0, %v603
    %v605 = vpop.f32.mrb[0].mxu0
    %v606 = vpop.f32.mrb[0].mxu0
    %v607 = vadd.f32 0.0, %v606
    %v608 = vpop.f32.mrb[0].mxu0
    %609 = vdwg.mxu0
    %v611 = vsel %vm561, %v544, 0
    %v614 = vsel %vm565, %v545, 0
    %616 = vmatprep.subr.bf16.mxu0 0
    %617 = vmatpush1.bf16.msra.mxu0 %v614
    %618 = vmatprep.subr.bf16.mxu0 0
    %619 = vmatpush1.bf16.msra.mxu0 0
    %620 = vmatprep.subr.bf16.mxu0 0
    %621 = vmatpush1.bf16.msra.mxu0 0
    %622 = vmatprep.subr.bf16.mxu0 0
    %623 = vmatpush1.bf16.msra.mxu0 0
    %624 = vmatprep.subr.bf16.mxu0 0
    %625 = vmatpush1.bf16.msra.mxu0 0
    %626 = vmatprep.subr.bf16.mxu0 0
    %627 = vmatpush1.bf16.msra.mxu0 0
    %628 = vmatprep.subr.bf16.mxu0 0
    %629 = vmatpush1.bf16.msra.mxu0 0
    %630 = vmatprep.subr.bf16.mxu0 0
    %631 = vmatpush1.bf16.msra.mxu0 0
    %632 = vmatprep.subr.bf16.mxu0 0
    %633 = vmatpush1.bf16.msra.mxu0 0
    %634 = vmatprep.subr.bf16.mxu0 0
    %635 = vmatpush1.bf16.msra.mxu0 0
    %636 = vmatprep.subr.bf16.mxu0 0
    %637 = vmatpush1.bf16.msra.mxu0 0
    %638 = vmatprep.subr.bf16.mxu0 0
    %639 = vmatpush1.bf16.msra.mxu0 0
    %640 = vmatprep.subr.bf16.mxu0 0
    %641 = vmatpush1.bf16.msra.mxu0 0
    %642 = vmatprep.subr.bf16.mxu0 0
    %643 = vmatpush1.bf16.msra.mxu0 0
    %644 = vmatprep.subr.bf16.mxu0 0
    %645 = vmatpush1.bf16.msra.mxu0 0
    %646 = vmatprep.subr.bf16.mxu0 0
    %647 = vmatpush1.bf16.msra.mxu0 0
    %648 = vmatprep.mubr.bf16.mxu0 0
    %649 = vmatmul.mubr.bf16.gmra.mrb[0].mxu0 %v611
    %v650 = vpop.f32.mrb[0].mxu0
    %v651 = vadd.f32 %v604, %v650
    %v652 = vpop.f32.mrb[0].mxu0
    %v653 = vpop.f32.mrb[0].mxu0
    %v654 = vadd.f32 %v607, %v653
    %v655 = vpop.f32.mrb[0].mxu0
    %656 = vdwg.mxu0
    %v657 = vrot.slane %v540, 2
    %v658 = vrot.slane %v542, 2
    %v659 = vsel %vm197, %v657, %v658
    %v660 = vrot.slane %v541, 2
    %v661 = vrot.slane %v543, 2
    %v662 = vsel %vm197, %v660, %v661
    %v665 = vpack.c.bf16 %v662, %v659
    %s666 = scalar_lea.vmem %s3, 4
    %v667 = vld [vmem:[%s666] sm:$0x3]
    %v669 = vsel %vm561, %v665, 0
    %v672 = vsel %vm565, %v667, 0
    %674 = vmatprep.subr.bf16.mxu0 0
    %675 = vmatpush1.bf16.msra.mxu0 %v672
    %676 = vmatprep.subr.bf16.mxu0 0
    %677 = vmatpush1.bf16.msra.mxu0 0
    %678 = vmatprep.subr.bf16.mxu0 0
    %679 = vmatpush1.bf16.msra.mxu0 0
    %680 = vmatprep.subr.bf16.mxu0 0
    %681 = vmatpush1.bf16.msra.mxu0 0
    %682 = vmatprep.subr.bf16.mxu0 0
    %683 = vmatpush1.bf16.msra.mxu0 0
    %684 = vmatprep.subr.bf16.mxu0 0
    %685 = vmatpush1.bf16.msra.mxu0 0
    %686 = vmatprep.subr.bf16.mxu0 0
    %687 = vmatpush1.bf16.msra.mxu0 0
    %688 = vmatprep.subr.bf16.mxu0 0
    %689 = vmatpush1.bf16.msra.mxu0 0
    %690 = vmatprep.subr.bf16.mxu0 0
    %691 = vmatpush1.bf16.msra.mxu0 0
    %692 = vmatprep.subr.bf16.mxu0 0
    %693 = vmatpush1.bf16.msra.mxu0 0
    %694 = vmatprep.subr.bf16.mxu0 0
    %695 = vmatpush1.bf16.msra.mxu0 0
    %696 = vmatprep.subr.bf16.mxu0 0
    %697 = vmatpush1.bf16.msra.mxu0 0
    %698 = vmatprep.subr.bf16.mxu0 0
    %699 = vmatpush1.bf16.msra.mxu0 0
    %700 = vmatprep.subr.bf16.mxu0 0
    %701 = vmatpush1.bf16.msra.mxu0 0
    %702 = vmatprep.subr.bf16.mxu0 0
    %703 = vmatpush1.bf16.msra.mxu0 0
    %704 = vmatprep.subr.bf16.mxu0 0
    %705 = vmatpush1.bf16.msra.mxu0 0
    %706 = vmatprep.mubr.bf16.mxu0 0
    %707 = vmatmul.mubr.bf16.gmra.mrb[0].mxu0 %v669
    %v708 = vpop.f32.mrb[0].mxu0
    %v709 = vadd.f32 0.0, %v708
    %v710 = vpop.f32.mrb[0].mxu0
    %v711 = vpop.f32.mrb[0].mxu0
    %v712 = vadd.f32 0.0, %v711
    %v713 = vpop.f32.mrb[0].mxu0
    %714 = vdwg.mxu0
    %v715 = vadd.f32 %v651, %v709
    %v716 = vadd.f32 %v654, %v712
    %v717 = vld [vmem:[%s4] sm:$0x1]
    %v719 = vlaneseq
    %v720 = vshrl.u32 %v719, 7
    %v721 = vsub.s32 0, %v720
    %v722 = vrot.slane %v717, %v721
    %v724 = vadd.f32 %v715, %v722
    %v725 = vadd.f32 %v716, %v722
    %vm726 = vcmp.ge.f32.partialorder %v724, 0.0
    %vm727 = vcmp.ge.f32.partialorder %v725, 0.0
    %v728 = vmul.f32 %v724, 0.01
    %v729 = vmul.f32 %v725, 0.01
    %v730 = vsel %vm726, %v724, %v728
    %v731 = vsel %vm727, %v725, %v729
    %v734 = vcombine.high %v730, %v730
    %v736 = vunpack.c.l.s4 1983009808
    %v737 = vunpack.c.0.s8 %v736
    %v738 = vlaneseq
    %v739 = vshrl.u32 %v738, 7
    %v740 = vsub.s32 %v737, %v739
    %v741 = vrot.slane %v730, %v740
    %v743 = vunpack.c.l.s4 1983009808
    %v744 = vunpack.c.0.s8 %v743
    %v745 = vlaneseq
    %v746 = vshrl.u32 %v745, 7
    %v747 = vsub.s32 %v744, %v746
    %v748 = vrot.slane %v734, %v747
    %v749 = vcombine.high %v741, %v741
    %v750 = vcombine.high %v748, %v748
    %v751 = vcombine.high %v731, %v731
    %v753 = vunpack.c.l.s4 1983009808
    %v754 = vunpack.c.0.s8 %v753
    %v755 = vlaneseq
    %v756 = vshrl.u32 %v755, 7
    %v757 = vsub.s32 %v754, %v756
    %v758 = vrot.slane %v731, %v757
    %v760 = vunpack.c.l.s4 1983009808
    %v761 = vunpack.c.0.s8 %v760
    %v762 = vlaneseq
    %v763 = vshrl.u32 %v762, 7
    %v764 = vsub.s32 %v761, %v763
    %v765 = vrot.slane %v751, %v764
    %v766 = vcombine.high %v758, %v758
    %v767 = vcombine.high %v765, %v765
    %vm776 = vcmask 58368
    %v777 = vsel %vm776, %v741, -inf
    %v778 = vrot.slane %v777, 4
    %v779 = vmax.f32 %v777, %v778
    %v780 = vrot.slane %v779, 2
    %v781 = vmax.f32 %v779, %v780
    %v782 = vrot.slane %v781, 1
    %v783 = vmax.f32 %v781, %v782
    %v784 = vsel %vm776, %v749, -inf
    %v785 = vrot.slane %v784, 4
    %v786 = vmax.f32 %v784, %v785
    %v787 = vrot.slane %v786, 2
    %v788 = vmax.f32 %v786, %v787
    %v789 = vrot.slane %v788, 1
    %v790 = vmax.f32 %v788, %v789
    %v791 = vsel %vm776, %v748, -inf
    %v792 = vrot.slane %v791, 4
    %v793 = vmax.f32 %v791, %v792
    %v794 = vrot.slane %v793, 2
    %v795 = vmax.f32 %v793, %v794
    %v796 = vrot.slane %v795, 1
    %v797 = vmax.f32 %v795, %v796
    %v798 = vsel %vm776, %v750, -inf
    %v799 = vrot.slane %v798, 4
    %v800 = vmax.f32 %v798, %v799
    %v801 = vrot.slane %v800, 2
    %v802 = vmax.f32 %v800, %v801
    %v803 = vrot.slane %v802, 1
    %v804 = vmax.f32 %v802, %v803
    %v805 = vsel %vm776, %v758, -inf
    %v806 = vrot.slane %v805, 4
    %v807 = vmax.f32 %v805, %v806
    %v808 = vrot.slane %v807, 2
    %v809 = vmax.f32 %v807, %v808
    %v810 = vrot.slane %v809, 1
    %v811 = vmax.f32 %v809, %v810
    %v812 = vsel %vm776, %v766, -inf
    %v813 = vrot.slane %v812, 4
    %v814 = vmax.f32 %v812, %v813
    %v815 = vrot.slane %v814, 2
    %v816 = vmax.f32 %v814, %v815
    %v817 = vrot.slane %v816, 1
    %v818 = vmax.f32 %v816, %v817
    %v819 = vsel %vm776, %v765, -inf
    %v820 = vrot.slane %v819, 4
    %v821 = vmax.f32 %v819, %v820
    %v822 = vrot.slane %v821, 2
    %v823 = vmax.f32 %v821, %v822
    %v824 = vrot.slane %v823, 1
    %v825 = vmax.f32 %v823, %v824
    %v826 = vsel %vm776, %v767, -inf
    %v827 = vrot.slane %v826, 4
    %v828 = vmax.f32 %v826, %v827
    %v829 = vrot.slane %v828, 2
    %v830 = vmax.f32 %v828, %v829
    %v831 = vrot.slane %v830, 1
    %v832 = vmax.f32 %v830, %v831
    %v833 = vld [vmem:[%s5] sm:$0xff]
    %v835 = vrot.slane %v833, 1
    %v836 = vrot.slane %v833, 2
    %v837 = vrot.slane %v833, 3
    %v838 = vrot.slane %v833, 4
    %v839 = vrot.slane %v833, 5
    %v840 = vrot.slane %v833, 6
    %v841 = vrot.slane %v833, 7
    %v850 = vmul.f32 %v783, %v833
    %v851 = vmul.f32 %v790, %v835
    %v852 = vmul.f32 %v797, %v836
    %v853 = vmul.f32 %v804, %v837
    %v854 = vmul.f32 %v811, %v838
    %v855 = vmul.f32 %v818, %v839
    %v856 = vmul.f32 %v825, %v840
    %v857 = vmul.f32 %v832, %v841
    %v866 = vrot.slane %v851, 7
    %vm867 = vcmask 1041409
    %v868 = vsel %vm867, %v866, %v850
    %v869 = vrot.slane %v852, 6
    %v870 = vsel %vm518, %v869, %v868
    %v871 = vrot.slane %v853, 5
    %v872 = vsel %vm520, %v871, %v870
    %v873 = vrot.slane %v854, 4
    %v874 = vsel %vm522, %v873, %v872
    %v875 = vrot.slane %v855, 3
    %v876 = vsel %vm524, %v875, %v874
    %v877 = vrot.slane %v856, 2
    %v878 = vsel %vm526, %v877, %v876
    %v879 = vrot.slane %v857, 1
    %v880 = vsel %vm528, %v879, %v878
    %vm882 = vcmask 64512
    %v883 = vsel %vm882, %v880, 0.0
    %884 = vadd.xlane.f32.xlu0 %v883
    %v885 = vpop.xlane.xlu0 %884
    %v888 = vunpack.c.l.s4 839922192
    %v889 = vunpack.c.0.s8 %v888
    %v890 = vlaneseq
    %v891 = vshrl.u32 %v890, 7
    %v892 = vsub.s32 %v889, %v891
    %v893 = vrot.slane %v885, %v892
    %v895 = vunpack.c.l.s4 1985246804
    %v896 = vunpack.c.0.s8 %v895
    %v897 = vlaneseq
    %v898 = vshrl.u32 %v897, 7
    %v899 = vsub.s32 %v896, %v898
    %v900 = vrot.slane %v885, %v899
    %vm903 = vcmask 1043456
    %v904 = vsel %vm903, %v893, 0.0
    %v905 = vrot.slane %v904, 4
    %v906 = vadd.f32 %v904, %v905
    %v907 = vrot.slane %v906, 2
    %v908 = vadd.f32 %v906, %v907
    %v909 = vrot.slane %v908, 1
    %v910 = vadd.f32 %v908, %v909
    %v911 = vsel %vm903, %v900, 0.0
    %v912 = vrot.slane %v911, 4
    %v913 = vadd.f32 %v911, %v912
    %v914 = vrot.slane %v913, 2
    %v915 = vadd.f32 %v913, %v914
    %v916 = vrot.slane %v915, 1
    %v917 = vadd.f32 %v915, %v916
    %v918 = vld [vmem:[%s6] sm:$0x1]
    %v920 = vlaneseq
    %v921 = vshrl.u32 %v920, 7
    %v922 = vsub.s32 0, %v921
    %v923 = vrot.slane %v918, %v922
    %v925 = vadd.f32 %v910, %v923
    %v926 = vadd.f32 %v917, %v923
    %v929 = vrot.slane %v926, 7
    %v930 = vsel %vm867, %v929, %v925
    %vm932 = vcmask 1024
    %933 = vst.msk [vmem:[#allocation2] sm:$0x3] %vm932, %v930
    %s934 = scalar_lea.vmem %s5, 8
    %v935 = vld [vmem:[%s934] sm:$0xff]
    %v937 = vrot.slane %v935, 1
    %v938 = vrot.slane %v935, 2
    %v939 = vrot.slane %v935, 3
    %v940 = vrot.slane %v935, 4
    %v941 = vrot.slane %v935, 5
    %v942 = vrot.slane %v935, 6
    %v943 = vrot.slane %v935, 7
    %v952 = vmul.f32 %v783, %v935
    %v953 = vmul.f32 %v790, %v937
    %v954 = vmul.f32 %v797, %v938
    %v955 = vmul.f32 %v804, %v939
    %v956 = vmul.f32 %v811, %v940
    %v957 = vmul.f32 %v818, %v941
    %v958 = vmul.f32 %v825, %v942
    %v959 = vmul.f32 %v832, %v943
    %v968 = vrot.slane %v953, 7
    %v969 = vsel %vm867, %v968, %v952
    %v970 = vrot.slane %v954, 6
    %v971 = vsel %vm518, %v970, %v969
    %v972 = vrot.slane %v955, 5
    %v973 = vsel %vm520, %v972, %v971
    %v974 = vrot.slane %v956, 4
    %v975 = vsel %vm522, %v974, %v973
    %v976 = vrot.slane %v957, 3
    %v977 = vsel %vm524, %v976, %v975
    %v978 = vrot.slane %v958, 2
    %v979 = vsel %vm526, %v978, %v977
    %v980 = vrot.slane %v959, 1
    %v981 = vsel %vm528, %v980, %v979
    %v983 = vsel %vm882, %v981, 0.0
    %984 = vadd.xlane.f32.xlu0 %v983
    %v985 = vpop.xlane.xlu0 %984
    %v988 = vunpack.c.l.s4 839922192
    %v989 = vunpack.c.0.s8 %v988
    %v990 = vlaneseq
    %v991 = vshrl.u32 %v990, 7
    %v992 = vsub.s32 %v989, %v991
    %v993 = vrot.slane %v985, %v992
    %v995 = vunpack.c.l.s4 1985246804
    %v996 = vunpack.c.0.s8 %v995
    %v997 = vlaneseq
    %v998 = vshrl.u32 %v997, 7
    %v999 = vsub.s32 %v996, %v998
    %v1000 = vrot.slane %v985, %v999
    %v1003 = vsel %vm903, %v993, 0.0
    %v1004 = vrot.slane %v1003, 4
    %v1005 = vadd.f32 %v1003, %v1004
    %v1006 = vrot.slane %v1005, 2
    %v1007 = vadd.f32 %v1005, %v1006
    %v1008 = vrot.slane %v1007, 1
    %v1009 = vadd.f32 %v1007, %v1008
    %v1010 = vsel %vm903, %v1000, 0.0
    %v1011 = vrot.slane %v1010, 4
    %v1012 = vadd.f32 %v1010, %v1011
    %v1013 = vrot.slane %v1012, 2
    %v1014 = vadd.f32 %v1012, %v1013
    %v1015 = vrot.slane %v1014, 1
    %v1016 = vadd.f32 %v1014, %v1015
    %v1017 = vld [vmem:[%s6] sm:$0x1]
    %v1019 = vlaneseq
    %v1020 = vshrl.u32 %v1019, 7
    %v1021 = vsub.s32 0, %v1020
    %v1022 = vrot.slane %v1017, %v1021
    %1023 = vrot.lane.b32.xlu0 %v1022, 127
    %v1024 = vpop.permute.xlu0 %1023
    %v1026 = vadd.f32 %v1009, %v1024
    %v1027 = vadd.f32 %v1016, %v1024
    %v1030 = vrot.slane %v1027, 7
    %v1031 = vsel %vm867, %v1030, %v1026
    %1032 = vrot.lane.b32.xlu0 %v1031, 1
    %v1033 = vpop.permute.xlu0 %1032
    %vm1035 = vcmask 9224
    %1036 = vst.msk [vmem:[#allocation2] sm:$0x3] %vm1035, %v1033
    // Predicated region
    $region30: #{tpu_custom_call.1} parent=1 // pred_check
      _
    $region31: #{tpu_custom_call.1} parent=1 // pred_check_branch
      %1038 = sbr.rel (0) target = $region33
    $region32: #{tpu_custom_call.1} parent=1 // pred_region
      %s1040 = ssub.s32 32, 32
      %1041 = vsyncadd [#allocation3], %s1040
      %s1043 = sshll.u32 [#allocation2], 4
      %s1044 = int_to_ptr.vmem [resolvable:$true] %s1043
      %1046 = dma.vmem_to_hbm [thread:$0]  %s1044, 32, %s7, [#allocation3]
    $region33: #{tpu_custom_call.1} parent=1 // pred_fallthru
      _
    // Predicated region
    $region34: #{tpu_custom_call.1} parent=1 // pred_check
      _
    $region35: #{tpu_custom_call.1} parent=1 // pred_check_branch
      %1048 = sbr.rel (0) target = $region37
    $region36: #{tpu_custom_call.1} parent=1 // pred_region
      %1049 = dma.done [#allocation3], 32
    $region37: #{tpu_custom_call.1} parent=1 // pred_fallthru
      _
    %1050 = vsyncpa [#allocation3], 1

</llo_original>
